<compile_context>
chip_gen: v7x
topology: tpu7x:2x2x1
jax: 0.10.0
libtpu: 0.0.40
codegen_flags: <defaults>
</compile_context>

<pallas_src>
import numpy as np
import jax
import jax.numpy as jnp
from jax.experimental import pallas as pl
from jax.experimental.pallas import tpu as pltpu


# ----------------------------------------------------------------------------
# Kernel 1: fused node projection, two lane-dense outputs
#   xw = x @ W_msg_x   (gathered by src to build per-edge messages)
#   xs = x @ W_self    (self term of the node update)
# bf16 operands, f32 accumulation.  Large row tile; weights stay VMEM-resident.
# ----------------------------------------------------------------------------
def _node_proj_kernel(x_ref, w1_ref, ws_ref, xw_ref, xs_ref):
    x = x_ref[...]
    xw_ref[...] = jnp.dot(x, w1_ref[...], preferred_element_type=jnp.float32)
    xs_ref[...] = jnp.dot(x, ws_ref[...], preferred_element_type=jnp.float32)


def _node_projection(x_pad_bf16, w1_bf16, ws_bf16, row_tile):
    n_pad, d = x_pad_bf16.shape
    hp = w1_bf16.shape[1]
    n_rows = n_pad // row_tile
    out_sds = jax.ShapeDtypeStruct((n_pad, hp), jnp.float32)
    return pl.pallas_call(
        _node_proj_kernel,
        out_shape=(out_sds, out_sds),
        grid_spec=pltpu.PrefetchScalarGridSpec(
            num_scalar_prefetch=0,
            grid=(n_rows,),
            in_specs=[pl.BlockSpec((row_tile, d), lambda i: (i, 0)),
                      pl.BlockSpec((d, hp), lambda i: (0, 0)),
                      pl.BlockSpec((d, hp), lambda i: (0, 0))],
            out_specs=[pl.BlockSpec((row_tile, hp), lambda i: (i, 0)),
                       pl.BlockSpec((row_tile, hp), lambda i: (i, 0))]),
        compiler_params=pltpu.CompilerParams(
            dimension_semantics=("parallel",),
            vmem_limit_bytes=32 * 1024 * 1024),
    )(x_pad_bf16, w1_bf16, ws_bf16)


# ----------------------------------------------------------------------------
# Kernel 2: edge-major streaming scatter-add + node update + sum-pool.
# Flat grid over sorted, per-node-tile-padded edge blocks.  tid_ref (scalar
# prefetch) holds the node-tile id of each block; blocks of a tile are contiguous.
# ----------------------------------------------------------------------------
def _scatter_pool_kernel(tid_ref,                      # scalar prefetch (SMEM)
                         msg_ref, dst_ref,             # edge-block stream (bf16 / i32)
                         xs_ref, batch_ref,            # node-tile inputs
                         b_ref,                        # bias (broadcast)
                         gout_ref,                     # (1, G, Hp) per-tile output
                         acc_ref):                     # (TN, Hp) f32 scratch
    blk = pl.program_id(0)
    nblk = pl.num_programs(0)
    te = dst_ref.shape[0]
    tn, hp = acc_ref.shape
    g = gout_ref.shape[1]

    tid = tid_ref[blk]
    prev_tid = tid_ref[jnp.maximum(blk - 1, 0)]
    next_tid = tid_ref[jnp.minimum(blk + 1, nblk - 1)]
    is_first = jnp.logical_or(blk == 0, prev_tid != tid)
    is_last = jnp.logical_or(blk == nblk - 1, next_tid != tid)

    @pl.when(is_first)
    def _init():
        acc_ref[...] = jnp.zeros_like(acc_ref)

    # Local one-hot scatter: onehot[e, n] = (dst[e] == tid*TN + n).  Padded edges
    # carry dst == n_pad, which matches no column.  bf16 one-hot is exact (0/1),
    # so the bf16 x bf16 MXU dot with f32 accumulation is an exact scatter-add of
    # the (already bf16-rounded) messages.
    cols = jax.lax.broadcasted_iota(jnp.int32, (te, tn), 1) + tid * tn
    onehot = (dst_ref[...] == cols).astype(jnp.bfloat16)            # (TE, TN)
    acc_ref[...] += jax.lax.dot_general(
        onehot, msg_ref[...], (((0,), (0,)), ((), ())),
        preferred_element_type=jnp.float32)                         # (TN, Hp)

    @pl.when(is_last)
    def _finalize():
        # node update + ReLU (node embeddings stay in VMEM, never written to HBM)
        h = jnp.maximum(xs_ref[...] + acc_ref[...] + b_ref[...], 0.0)   # (TN, Hp)
        # sum-pool into per-graph partials via a tiny (TN, G) one-hot; padded nodes
        # have batch id == G and are excluded.
        gids = jax.lax.broadcasted_iota(jnp.int32, (tn, g), 1)
        pool = (batch_ref[...] == gids).astype(jnp.float32)             # (TN, G)
        gout_ref[...] = jax.lax.dot_general(
            pool, h, (((0,), (0,)), ((), ())),
            preferred_element_type=jnp.float32)[None]                   # (1, G, Hp)


# ----------------------------------------------------------------------------
# One MPN layer + sum pooling
# ----------------------------------------------------------------------------
def mpn_layer_pallas(x, edge_index, edge_attr, batch, params, num_graphs,
                     *, node_tile=128, edge_tile=256, proj_tile=256):
    # node_tile/edge_tile = 128/256 matches the v5e MXU; on v6e/v7x use 256/512 to
    # fill the 256-wide MXU (re-budget VMEM on v7x, see vmem_limit_bytes below).
    assert proj_tile % node_tile == 0
    x = jnp.asarray(x, jnp.float32)
    edge_attr = jnp.asarray(edge_attr, jnp.float32)
    n, d = x.shape
    e, de = edge_attr.shape
    h = params["w_self"].shape[1]
    hp = max(128, ((h + 127) // 128) * 128)       # lane-dense hidden (128, not 256)
    g = int(num_graphs)
    tn, te = int(node_tile), int(edge_tile)

    # ---- zero-pad weights to lane-dense Hp (exact: relu(0)=0, padding sliced off) --
    w1 = jnp.zeros((d, hp), jnp.float32).at[:, :h].set(params["w_msg"][:d])
    w2 = jnp.zeros((de, hp), jnp.float32).at[:, :h].set(params["w_msg"][d:])
    ws = jnp.zeros((d, hp), jnp.float32).at[:, :h].set(params["w_self"])
    bp = jnp.zeros((1, hp), jnp.float32).at[:, :h].set(params["b"])

    # ---- pad nodes to a multiple of proj_tile (also a multiple of node_tile) -------
    n_pad = max(proj_tile, -(-n // proj_tile) * proj_tile)
    n_tiles = n_pad // tn
    x_pad = jnp.zeros((n_pad, d), jnp.float32).at[:n].set(x)
    batch_pad = jnp.full((n_pad, 1), g, jnp.int32).at[:n, 0].set(
        jnp.asarray(batch, jnp.int32))            # pad nodes -> graph id G (ignored)

    # ---- Kernel 1: hoisted node projections (bf16 operands, two f32 outputs) -------
    xw, xs = _node_projection(x_pad.astype(jnp.bfloat16),
                              w1.astype(jnp.bfloat16),
                              ws.astype(jnp.bfloat16),
                              proj_tile)          # each (N_pad, Hp) f32

    # ---- host-side glue: sort edges by dst, lay out per-node-tile padded blocks ----
    # TODO(synk): this numpy preprocessing (argsort/searchsorted/layout) should be
    # precomputed once per batch with a static layout so both layers stay in one jit;
    # here it runs eagerly per call.
    src_np = np.asarray(edge_index[0]).astype(np.int64)
    dst_np = np.asarray(edge_index[1]).astype(np.int64)
    order = np.argsort(dst_np, kind="stable")
    src_s, dst_s = src_np[order], dst_np[order]

    lo = np.searchsorted(dst_s, np.arange(n_tiles) * tn, side="left")
    hi = np.searchsorted(dst_s, (np.arange(n_tiles) + 1) * tn, side="left")
    cnt = (hi - lo).astype(np.int64)
    blocks_per_tile = np.maximum(1, -(-cnt // te))          # >=1 so every tile flushes
    tile_block_start = np.concatenate(
        [np.zeros(1, np.int64), np.cumsum(blocks_per_tile)])[:-1]
    total_blocks = int(blocks_per_tile.sum())
    e_layout = total_blocks * te

    # slot of each (sorted) real edge inside the padded block layout
    t_of_edge = np.minimum(dst_s // tn, n_tiles - 1)
    slot = (tile_block_start[t_of_edge] * te
            + (np.arange(e, dtype=np.int64) - lo[t_of_edge]))

    dst_lay_np = np.full((e_layout, 1), n_pad, np.int32)    # pad dst matches no column
    if e > 0:
        dst_lay_np[slot, 0] = dst_s.astype(np.int32)
    tile_id_np = np.repeat(np.arange(n_tiles, dtype=np.int32),
                           blocks_per_tile).astype(np.int32)

    # ---- per-edge messages (XLA): gathered src projection + f32 edge-attr GEMM -----
    # K=de is tiny, so this stays in XLA; keeping it f32 preserves accuracy cheaply.
    order_j = jnp.asarray(order, jnp.int32)
    src_s_j = jnp.asarray(src_s, jnp.int32)
    slot_j = jnp.asarray(slot, jnp.int32)
    msg = xw[src_s_j] + edge_attr[order_j] @ w2              # (E, Hp) f32
    msg_lay = jnp.zeros((e_layout, hp), jnp.bfloat16).at[slot_j].set(
        msg.astype(jnp.bfloat16))                            # bf16 edge stream
    dst_lay = jnp.asarray(dst_lay_np)
    tile_id = jnp.asarray(tile_id_np)

    # ---- advisory cost estimate -----------------------------------------------------
    flops = 2 * total_blocks * te * tn * hp + 2 * n_tiles * tn * g * hp
    bytes_accessed = (e_layout * (hp * 2 + 4)     # bf16 msg + i32 dst
                      + n_pad * (hp * 4 + 4)      # xs + batch
                      + hp * 4                    # bias
                      + n_tiles * g * hp * 4)     # per-tile pooled partials
    ce = pl.CostEstimate(flops=int(flops), transcendentals=0,
                         bytes_accessed=int(bytes_accessed))

    # ---- Kernel 2: flat edge-major scatter + update + pool ---------------------------
    # If profiling shows exposed DMA on the msg/dst streams, add
    # pipeline_mode=pl.Buffered(3) to those two BlockSpecs only.
    grid_spec = pltpu.PrefetchScalarGridSpec(
        num_scalar_prefetch=1,
        grid=(total_blocks,),
        in_specs=[
            pl.BlockSpec((te, hp), lambda blk, tid: (blk, 0)),       # bf16 messages
            pl.BlockSpec((te, 1), lambda blk, tid: (blk, 0)),        # int32 dst
            pl.BlockSpec((tn, hp), lambda blk, tid: (tid[blk], 0)),  # self projection
            pl.BlockSpec((tn, 1), lambda blk, tid: (tid[blk], 0)),   # batch ids
            pl.BlockSpec((1, hp), lambda blk, tid: (0, 0)),          # bias
        ],
        out_specs=pl.BlockSpec((1, g, hp), lambda blk, tid: (tid[blk], 0, 0)),
        scratch_shapes=[pltpu.VMEM((tn, hp), jnp.float32)],
    )
    partials = pl.pallas_call(
        _scatter_pool_kernel,
        out_shape=jax.ShapeDtypeStruct((n_tiles, g, hp), jnp.float32),
        grid_spec=grid_spec,
        compiler_params=pltpu.CompilerParams(
            dimension_semantics=("arbitrary",),
            # <= ~48 MiB keeps the plan valid on v7x's 64 MiB VMEM; raise toward
            # 64-100 MiB on v5e/v6e if edge tiles / buffer depth are grown further.
            vmem_limit_bytes=48 * 1024 * 1024),
        cost_estimate=ce,
    )(tile_id, msg_lay, dst_lay, xs, batch_pad, bp)

    # tiny reduction over node tiles + drop the lane padding
    graph_emb = partials.sum(axis=0)[:, :h]
    return graph_emb


# ----------------------------------------------------------------------------
# ProtMPN forward: prot_mode='surface2backbone' (bottom=surface, top=backbone)
# ----------------------------------------------------------------------------
def prot_mpn_forward(data, params):
    num_graphs = data["num_graphs"]
    surf, bb = data["surface"], data["backbone"]
    bottom_graph_emb = mpn_layer_pallas(
        surf["x"], surf["edge_index"], surf["edge_attr"], surf["batch"],
        params["surface_mpn"], num_graphs)
    top_graph_emb = mpn_layer_pallas(
        bb["x"], bb["edge_index"], bb["edge_attr"], bb["batch"],
        params["backbone_mpn"], num_graphs)
    return top_graph_emb, bottom_graph_emb


# ----------------------------------------------------------------------------
# Pure-JAX f32 reference (module semantics) for correctness check
# ----------------------------------------------------------------------------
def _mpn_ref(x, edge_index, edge_attr, batch, params, num_graphs):
    src, dst = edge_index[0], edge_index[1]
    msgs = jnp.concatenate([x[src], edge_attr], axis=-1) @ params["w_msg"]
    agg = jax.ops.segment_sum(msgs, dst, num_segments=x.shape[0])
    h = jax.nn.relu(x @ params["w_self"] + agg + params["b"])
    return jax.ops.segment_sum(h, batch, num_segments=num_graphs)


def prot_mpn_forward_ref(data, params):
    num_graphs = data["num_graphs"]
    surf, bb = data["surface"], data["backbone"]
    bottom = _mpn_ref(surf["x"], surf["edge_index"], surf["edge_attr"],
                      surf["batch"], params["surface_mpn"], num_graphs)
    top = _mpn_ref(bb["x"], bb["edge_index"], bb["edge_attr"],
                   bb["batch"], params["backbone_mpn"], num_graphs)
    return top, bottom


# ----------------------------------------------------------------------------
# Deterministic parameter / data construction
# ----------------------------------------------------------------------------
def init_mpn_params(key, node_dim, edge_dim, hidden):
    k1, k2, k3 = jax.random.split(key, 3)
    s = 0.1
    return {
        "w_msg": s * jax.random.normal(k1, (node_dim + edge_dim, hidden), jnp.float32),
        "w_self": s * jax.random.normal(k2, (node_dim, hidden), jnp.float32),
        "b": s * jax.random.normal(k3, (1, hidden), jnp.float32),
    }


def make_graph(key, n_nodes, n_edges, node_dim, edge_dim):
    kx, ke, ks, kd = jax.random.split(key, 4)
    x = jax.random.normal(kx, (n_nodes, node_dim), jnp.float32)
    edge_attr = jax.random.normal(ke, (n_edges, edge_dim), jnp.float32)
    src = jax.random.randint(ks, (n_edges,), 0, n_nodes, jnp.int32)
    dst = jax.random.randint(kd, (n_edges,), 0, n_nodes, jnp.int32)
    edge_index = jnp.stack([src, dst], axis=0)
    batch = jnp.concatenate([
        jnp.zeros((n_nodes // 2,), jnp.int32),
        jnp.ones((n_nodes - n_nodes // 2,), jnp.int32),
    ])
    return {"x": x, "edge_index": edge_index, "edge_attr": edge_attr,
            "batch": batch}


if __name__ == "__main__":
    key = jax.random.PRNGKey(0)
    k_surf, k_bb, k_ps, k_pb = jax.random.split(key, 4)

    NUM_GRAPHS = 2
    NODE_DIM, EDGE_DIM, HIDDEN = 16, 8, 32

    data = {
        "num_graphs": NUM_GRAPHS,
        "surface": make_graph(k_surf, n_nodes=32, n_edges=64,
                              node_dim=NODE_DIM, edge_dim=EDGE_DIM),
        "backbone": make_graph(k_bb, n_nodes=16, n_edges=32,
                               node_dim=NODE_DIM, edge_dim=EDGE_DIM),
    }
    params = {
        "surface_mpn": init_mpn_params(k_ps, NODE_DIM, EDGE_DIM, HIDDEN),
        "backbone_mpn": init_mpn_params(k_pb, NODE_DIM, EDGE_DIM, HIDDEN),
    }

    top_emb, bottom_emb = prot_mpn_forward(data, params)
    top_emb = jax.block_until_ready(top_emb)
    bottom_emb = jax.block_until_ready(bottom_emb)

    top_ref, bottom_ref = prot_mpn_forward_ref(data, params)

    assert top_emb.shape == (NUM_GRAPHS, HIDDEN)
    assert bottom_emb.shape == (NUM_GRAPHS, HIDDEN)
    # bf16 matmul operands / bf16 message stream (f32 accumulation) vs f32 reference
    assert jnp.allclose(top_emb, top_ref, rtol=5e-2, atol=5e-2)
    assert jnp.allclose(bottom_emb, bottom_ref, rtol=5e-2, atol=5e-2)

    print("KERNEL_OK")
</pallas_src>

<mosaic_0001>
module attributes {stable_mosaic.version = 11 : i64} {
  func.func @_node_proj_kernel(%arg0: i32, %arg1: memref<256x16xbf16, #tpu.memory_space<vmem>>, %arg2: memref<16x128xbf16, #tpu.memory_space<vmem>>, %arg3: memref<16x128xbf16, #tpu.memory_space<vmem>>, %arg4: memref<256x128xf32, #tpu.memory_space<vmem>>, %arg5: memref<256x128xf32, #tpu.memory_space<vmem>>) attributes {dimension_semantics = [#tpu.dimension_semantics<parallel>], iteration_bounds = array<i64: 1>, scalar_prefetch = 0 : i64, scratch_operands = 0 : i64, tpu.core_type = #tpu.core_type<tc>, window_params = [{transform_indices = @transform_0, window_bounds = array<i64: 256, 16>}, {pipeline_mode = #tpu.pipeline_mode<synchronous>, transform_indices = @transform_1, window_bounds = array<i64: 16, 128>}, {pipeline_mode = #tpu.pipeline_mode<synchronous>, transform_indices = @transform_2, window_bounds = array<i64: 16, 128>}, {transform_indices = @transform_3, window_bounds = array<i64: 256, 128>}, {transform_indices = @transform_4, window_bounds = array<i64: 256, 128>}]} {
    %c0 = arith.constant 0 : index
    %c0_0 = arith.constant 0 : index
    %0 = vector.load %arg1[%c0, %c0_0] : memref<256x16xbf16, #tpu.memory_space<vmem>>, vector<256x16xbf16>
    %c0_1 = arith.constant 0 : index
    %c0_2 = arith.constant 0 : index
    %1 = vector.load %arg2[%c0_1, %c0_2] : memref<16x128xbf16, #tpu.memory_space<vmem>>, vector<16x128xbf16>
    %cst = arith.constant dense<0.000000e+00> : vector<256x128xf32>
    %2 = tpu.matmul %0, %1, %cst {dimension_numbers = #tpu.dot_dimension_numbers<[1], [0], [0], [1], [0, 0, 1, 1], [], []>} : vector<256x16xbf16>, vector<16x128xbf16>, vector<256x128xf32> -> vector<256x128xf32>
    %c0_3 = arith.constant 0 : index
    %c0_4 = arith.constant 0 : index
    %3 = vector.load %arg4[%c0_3, %c0_4] : memref<256x128xf32, #tpu.memory_space<vmem>>, vector<256x128xf32>
    tpu.vector_store %arg4[%c0_3, %c0_4], %2 {strides = array<i32>} : memref<256x128xf32, #tpu.memory_space<vmem>>, vector<256x128xf32>,
    %c0_5 = arith.constant 0 : index
    %c0_6 = arith.constant 0 : index
    %4 = vector.load %arg3[%c0_5, %c0_6] : memref<16x128xbf16, #tpu.memory_space<vmem>>, vector<16x128xbf16>
    %cst_7 = arith.constant dense<0.000000e+00> : vector<256x128xf32>
    %5 = tpu.matmul %0, %4, %cst_7 {dimension_numbers = #tpu.dot_dimension_numbers<[1], [0], [0], [1], [0, 0, 1, 1], [], []>} : vector<256x16xbf16>, vector<16x128xbf16>, vector<256x128xf32> -> vector<256x128xf32>
    %c0_8 = arith.constant 0 : index
    %c0_9 = arith.constant 0 : index
    %6 = vector.load %arg5[%c0_8, %c0_9] : memref<256x128xf32, #tpu.memory_space<vmem>>, vector<256x128xf32>
    tpu.vector_store %arg5[%c0_8, %c0_9], %5 {strides = array<i32>} : memref<256x128xf32, #tpu.memory_space<vmem>>, vector<256x128xf32>,
    return
  }
  func.func @transform_0(%arg0: i32) -> (i32, i32) {
    %c0_i32 = arith.constant 0 : i32
    %c0_i32_0 = arith.constant 0 : i32
    return %arg0, %c0_i32 : i32, i32
  }
  func.func @transform_1(%arg0: i32) -> (i32, i32) {
    %c0_i32 = arith.constant 0 : i32
    %c0_i32_0 = arith.constant 0 : i32
    %c0_i32_1 = arith.constant 0 : i32
    return %c0_i32, %c0_i32_0 : i32, i32
  }
  func.func @transform_2(%arg0: i32) -> (i32, i32) {
    %c0_i32 = arith.constant 0 : i32
    %c0_i32_0 = arith.constant 0 : i32
    %c0_i32_1 = arith.constant 0 : i32
    return %c0_i32, %c0_i32_0 : i32, i32
  }
  func.func @transform_3(%arg0: i32) -> (i32, i32) {
    %c0_i32 = arith.constant 0 : i32
    %c0_i32_0 = arith.constant 0 : i32
    return %arg0, %c0_i32 : i32, i32
  }
  func.func @transform_4(%arg0: i32) -> (i32, i32) {
    %c0_i32 = arith.constant 0 : i32
    %c0_i32_0 = arith.constant 0 : i32
    return %arg0, %c0_i32 : i32, i32
  }
}

</mosaic_0001>

<llo_original>
// kernel: tpu_custom_call.1
$region0: #{tpu_custom_call.1}
  #allocation0 [shape = 'u32[]', space=smem, size = 0x4, offset = 0x4, fixed_abs, tag = 'smem constant byte address 0x4 - core index']
  #allocation1 [shape = 'u32[144,128]{1,0:T(1,128)}', space=vmem, size = 0x12000, scoped, tag = 'internal scratch']
  %s0 = inlined_call_operand.vmem [shape: bf16[256,16], index: 0, kind: input, shape index: {}]
  %s1 = inlined_call_operand.vmem [shape: bf16[16,128], index: 1, kind: input, shape index: {}]
  %s2 = inlined_call_operand.vmem [shape: bf16[16,128], index: 2, kind: input, shape index: {}]
  %s3 = inlined_call_operand.hbm [shape: f32[256,128], index: 3, kind: output, shape index: {0}]
  %s4 = inlined_call_operand.hbm [shape: f32[256,128], index: 4, kind: output, shape index: {1}]
  %5 = xla_tuple %s3, %s4
  %s6 = sld [smem:[#allocation0]]
  $region30: #{tpu_custom_call.1} parent=0
    _
  %s8 = ssub.s32 1, %s6
  %s9 = scalar_select 0, %s8, %s6
  $region1: #{tpu_custom_call.1} parent=0
    #allocation2 [shape = 'u8[131072]{0}', space=vmem, size = 0x20000, scoped, tag = 'output window, operand 0, single buffered']
    #allocation3 [shape = 's32[1]{0}', space=sflag, size = 0x4, scoped, tag = 'scoped memory for tpu_custom_call.1']
    #allocation4 [shape = 'u8[131072]{0}', space=vmem, size = 0x20000, scoped, tag = 'output window, operand 1, single buffered']
    #allocation5 [shape = 's32[1]{0}', space=sflag, size = 0x4, scoped, tag = 'scoped memory for tpu_custom_call.1']
    %10 = vsyncpa [#allocation3], 0
    %11 = vsyncpa [#allocation5], 0
    // Predicated region
    $region2: #{tpu_custom_call.1} parent=1 // pred_check
      _
    $region3: #{tpu_custom_call.1} parent=1 // pred_check_branch
      %13 = sbr.rel (0) target = $region5
    $region4: #{tpu_custom_call.1} parent=1 // pred_region
      _
    $region5: #{tpu_custom_call.1} parent=1 // pred_fallthru
      _
    // Predicated region
    $region6: #{tpu_custom_call.1} parent=1 // pred_check
      _
    $region7: #{tpu_custom_call.1} parent=1 // pred_check_branch
      %15 = sbr.rel (0) target = $region9
    $region8: #{tpu_custom_call.1} parent=1 // pred_region
      _
    $region9: #{tpu_custom_call.1} parent=1 // pred_fallthru
      _
    // Predicated region
    $region10: #{tpu_custom_call.1} parent=1 // pred_check
      _
    $region11: #{tpu_custom_call.1} parent=1 // pred_check_branch
      %17 = sbr.rel (0) target = $region13
    $region12: #{tpu_custom_call.1} parent=1 // pred_region
      _
    $region13: #{tpu_custom_call.1} parent=1 // pred_fallthru
      _
    %v19 = vld [vmem:[%s0] sm:$0xf]
    %v20 = vld [vmem:[%s0 + $0x4] sm:$0xf]
    %v21 = vld [vmem:[%s0 + $0x8] sm:$0xf]
    %v22 = vld [vmem:[%s0 + $0xc] sm:$0xf]
    %v23 = vld [vmem:[%s0 + $0x10] sm:$0xf]
    %v24 = vld [vmem:[%s0 + $0x14] sm:$0xf]
    %v25 = vld [vmem:[%s0 + $0x18] sm:$0xf]
    %v26 = vld [vmem:[%s0 + $0x1c] sm:$0xf]
    %v27 = vld [vmem:[%s0 + $0x20] sm:$0xf]
    %v28 = vld [vmem:[%s0 + $0x24] sm:$0xf]
    %v29 = vld [vmem:[%s0 + $0x28] sm:$0xf]
    %v30 = vld [vmem:[%s0 + $0x2c] sm:$0xf]
    %v31 = vld [vmem:[%s0 + $0x30] sm:$0xf]
    %v32 = vld [vmem:[%s0 + $0x34] sm:$0xf]
    %v33 = vld [vmem:[%s0 + $0x38] sm:$0xf]
    %v34 = vld [vmem:[%s0 + $0x3c] sm:$0xf]
    %v35 = vld [vmem:[%s0 + $0x40] sm:$0xf]
    %v36 = vld [vmem:[%s0 + $0x44] sm:$0xf]
    %v37 = vld [vmem:[%s0 + $0x48] sm:$0xf]
    %v38 = vld [vmem:[%s0 + $0x4c] sm:$0xf]
    %v39 = vld [vmem:[%s0 + $0x50] sm:$0xf]
    %v40 = vld [vmem:[%s0 + $0x54] sm:$0xf]
    %v41 = vld [vmem:[%s0 + $0x58] sm:$0xf]
    %v42 = vld [vmem:[%s0 + $0x5c] sm:$0xf]
    %v43 = vld [vmem:[%s0 + $0x60] sm:$0xf]
    %v44 = vld [vmem:[%s0 + $0x64] sm:$0xf]
    %v45 = vld [vmem:[%s0 + $0x68] sm:$0xf]
    %v46 = vld [vmem:[%s0 + $0x6c] sm:$0xf]
    %v47 = vld [vmem:[%s0 + $0x70] sm:$0xf]
    %v48 = vld [vmem:[%s0 + $0x74] sm:$0xf]
    %v49 = vld [vmem:[%s0 + $0x78] sm:$0xf]
    %v50 = vld [vmem:[%s0 + $0x7c] sm:$0xf]
    %v51 = vld [vmem:[%s1] sm:$0xf]
    %v52 = vld [vmem:[%s1 + $0x4] sm:$0xf]
    %v85 = vunpack.c.l.b16 %v19
    %v86 = vunpack.c.l.b16 %v20
    %v87 = vunpack.c.l.b16 %v21
    %v88 = vunpack.c.l.b16 %v22
    %v89 = vunpack.c.l.b16 %v23
    %v90 = vunpack.c.l.b16 %v24
    %v91 = vunpack.c.l.b16 %v25
    %v92 = vunpack.c.l.b16 %v26
    %v93 = vunpack.c.l.b16 %v27
    %v94 = vunpack.c.l.b16 %v28
    %v95 = vunpack.c.l.b16 %v29
    %v96 = vunpack.c.l.b16 %v30
    %v97 = vunpack.c.l.b16 %v31
    %v98 = vunpack.c.l.b16 %v32
    %v99 = vunpack.c.l.b16 %v33
    %v100 = vunpack.c.l.b16 %v34
    %v101 = vunpack.c.l.b16 %v35
    %v102 = vunpack.c.l.b16 %v36
    %v103 = vunpack.c.l.b16 %v37
    %v104 = vunpack.c.l.b16 %v38
    %v105 = vunpack.c.l.b16 %v39
    %v106 = vunpack.c.l.b16 %v40
    %v107 = vunpack.c.l.b16 %v41
    %v108 = vunpack.c.l.b16 %v42
    %v109 = vunpack.c.l.b16 %v43
    %v110 = vunpack.c.l.b16 %v44
    %v111 = vunpack.c.l.b16 %v45
    %v112 = vunpack.c.l.b16 %v46
    %v113 = vunpack.c.l.b16 %v47
    %v114 = vunpack.c.l.b16 %v48
    %v115 = vunpack.c.l.b16 %v49
    %v116 = vunpack.c.l.b16 %v50
    %v117 = vpack.c.b16 %v86, %v85
    %v118 = vpack.c.b16 %v88, %v87
    %v119 = vpack.c.b16 %v90, %v89
    %v120 = vpack.c.b16 %v92, %v91
    %v121 = vpack.c.b16 %v94, %v93
    %v122 = vpack.c.b16 %v96, %v95
    %v123 = vpack.c.b16 %v98, %v97
    %v124 = vpack.c.b16 %v100, %v99
    %v125 = vpack.c.b16 %v102, %v101
    %v126 = vpack.c.b16 %v104, %v103
    %v127 = vpack.c.b16 %v106, %v105
    %v128 = vpack.c.b16 %v108, %v107
    %v129 = vpack.c.b16 %v110, %v109
    %v130 = vpack.c.b16 %v112, %v111
    %v131 = vpack.c.b16 %v114, %v113
    %v132 = vpack.c.b16 %v116, %v115
    %v135 = vunpack.c.l.b16 %v51
    %v136 = vunpack.c.l.b16 %v52
    %v137 = vpack.c.b16 %v136, %v135
    %vm139 = vcmask 130048
    %v141 = vsel %vm139, %v117, 0
    %v144 = vsel %vm139, %v118, 0
    %v147 = vsel %vm139, %v119, 0
    %v150 = vsel %vm139, %v120, 0
    %v153 = vsel %vm139, %v121, 0
    %v156 = vsel %vm139, %v122, 0
    %v159 = vsel %vm139, %v123, 0
    %v162 = vsel %vm139, %v124, 0
    %v165 = vsel %vm139, %v125, 0
    %v168 = vsel %vm139, %v126, 0
    %v171 = vsel %vm139, %v127, 0
    %v174 = vsel %vm139, %v128, 0
    %v177 = vsel %vm139, %v129, 0
    %v180 = vsel %vm139, %v130, 0
    %v183 = vsel %vm139, %v131, 0
    %v186 = vsel %vm139, %v132, 0
    %188 = vmatprep.subr.bf16.mxu0 0
    %189 = vmatpush1.bf16.msra.mxu0 %v137
    %190 = vmatprep.subr.bf16.mxu0 0
    %191 = vmatpush1.bf16.msra.mxu0 0
    %192 = vmatprep.subr.bf16.mxu0 0
    %193 = vmatpush1.bf16.msra.mxu0 0
    %194 = vmatprep.subr.bf16.mxu0 0
    %195 = vmatpush1.bf16.msra.mxu0 0
    %196 = vmatprep.subr.bf16.mxu0 0
    %197 = vmatpush1.bf16.msra.mxu0 0
    %198 = vmatprep.subr.bf16.mxu0 0
    %199 = vmatpush1.bf16.msra.mxu0 0
    %200 = vmatprep.subr.bf16.mxu0 0
    %201 = vmatpush1.bf16.msra.mxu0 0
    %202 = vmatprep.subr.bf16.mxu0 0
    %203 = vmatpush1.bf16.msra.mxu0 0
    %204 = vmatprep.subr.bf16.mxu0 0
    %205 = vmatpush1.bf16.msra.mxu0 0
    %206 = vmatprep.subr.bf16.mxu0 0
    %207 = vmatpush1.bf16.msra.mxu0 0
    %208 = vmatprep.subr.bf16.mxu0 0
    %209 = vmatpush1.bf16.msra.mxu0 0
    %210 = vmatprep.subr.bf16.mxu0 0
    %211 = vmatpush1.bf16.msra.mxu0 0
    %212 = vmatprep.subr.bf16.mxu0 0
    %213 = vmatpush1.bf16.msra.mxu0 0
    %214 = vmatprep.subr.bf16.mxu0 0
    %215 = vmatpush1.bf16.msra.mxu0 0
    %216 = vmatprep.subr.bf16.mxu0 0
    %217 = vmatpush1.bf16.msra.mxu0 0
    %218 = vmatprep.subr.bf16.mxu0 0
    %219 = vmatpush1.bf16.msra.mxu0 0
    %220 = vmatprep.mubr.bf16.mxu0 0
    %221 = vmatmul.mubr.bf16.gmra.mrb[0].mxu0 %v141
    %v222 = vpop.f32.mrb[0].mxu0
    %v223 = vadd.f32 0.0, %v222
    %v224 = vpop.f32.mrb[0].mxu0
    %v225 = vpop.f32.mrb[0].mxu0
    %v226 = vadd.f32 0.0, %v225
    %v227 = vpop.f32.mrb[0].mxu0
    %228 = vmatprep.mubr.bf16.mxu0 0
    %229 = vmatmul.mubr.bf16.gmra.mrb[0].mxu0 %v144
    %v230 = vpop.f32.mrb[0].mxu0
    %v231 = vadd.f32 0.0, %v230
    %v232 = vpop.f32.mrb[0].mxu0
    %v233 = vpop.f32.mrb[0].mxu0
    %v234 = vadd.f32 0.0, %v233
    %v235 = vpop.f32.mrb[0].mxu0
    %236 = vmatprep.mubr.bf16.mxu0 0
    %237 = vmatmul.mubr.bf16.gmra.mrb[0].mxu0 %v147
    %v238 = vpop.f32.mrb[0].mxu0
    %v239 = vadd.f32 0.0, %v238
    %v240 = vpop.f32.mrb[0].mxu0
    %v241 = vpop.f32.mrb[0].mxu0
    %v242 = vadd.f32 0.0, %v241
    %v243 = vpop.f32.mrb[0].mxu0
    %244 = vmatprep.mubr.bf16.mxu0 0
    %245 = vmatmul.mubr.bf16.gmra.mrb[0].mxu0 %v150
    %v246 = vpop.f32.mrb[0].mxu0
    %v247 = vadd.f32 0.0, %v246
    %v248 = vpop.f32.mrb[0].mxu0
    %v249 = vpop.f32.mrb[0].mxu0
    %v250 = vadd.f32 0.0, %v249
    %v251 = vpop.f32.mrb[0].mxu0
    %252 = vmatprep.mubr.bf16.mxu0 0
    %253 = vmatmul.mubr.bf16.gmra.mrb[0].mxu0 %v153
    %v254 = vpop.f32.mrb[0].mxu0
    %v255 = vadd.f32 0.0, %v254
    %v256 = vpop.f32.mrb[0].mxu0
    %v257 = vpop.f32.mrb[0].mxu0
    %v258 = vadd.f32 0.0, %v257
    %v259 = vpop.f32.mrb[0].mxu0
    %260 = vmatprep.mubr.bf16.mxu0 0
    %261 = vmatmul.mubr.bf16.gmra.mrb[0].mxu0 %v156
    %v262 = vpop.f32.mrb[0].mxu0
    %v263 = vadd.f32 0.0, %v262
    %v264 = vpop.f32.mrb[0].mxu0
    %v265 = vpop.f32.mrb[0].mxu0
    %v266 = vadd.f32 0.0, %v265
    %v267 = vpop.f32.mrb[0].mxu0
    %268 = vmatprep.mubr.bf16.mxu0 0
    %269 = vmatmul.mubr.bf16.gmra.mrb[0].mxu0 %v159
    %v270 = vpop.f32.mrb[0].mxu0
    %v271 = vadd.f32 0.0, %v270
    %v272 = vpop.f32.mrb[0].mxu0
    %v273 = vpop.f32.mrb[0].mxu0
    %v274 = vadd.f32 0.0, %v273
    %v275 = vpop.f32.mrb[0].mxu0
    %276 = vmatprep.mubr.bf16.mxu0 0
    %277 = vmatmul.mubr.bf16.gmra.mrb[0].mxu0 %v162
    %v278 = vpop.f32.mrb[0].mxu0
    %v279 = vadd.f32 0.0, %v278
    %v280 = vpop.f32.mrb[0].mxu0
    %v281 = vpop.f32.mrb[0].mxu0
    %v282 = vadd.f32 0.0, %v281
    %v283 = vpop.f32.mrb[0].mxu0
    %284 = vmatprep.mubr.bf16.mxu0 0
    %285 = vmatmul.mubr.bf16.gmra.mrb[0].mxu0 %v165
    %v286 = vpop.f32.mrb[0].mxu0
    %v287 = vadd.f32 0.0, %v286
    %v288 = vpop.f32.mrb[0].mxu0
    %v289 = vpop.f32.mrb[0].mxu0
    %v290 = vadd.f32 0.0, %v289
    %v291 = vpop.f32.mrb[0].mxu0
    %292 = vmatprep.mubr.bf16.mxu0 0
    %293 = vmatmul.mubr.bf16.gmra.mrb[0].mxu0 %v168
    %v294 = vpop.f32.mrb[0].mxu0
    %v295 = vadd.f32 0.0, %v294
    %v296 = vpop.f32.mrb[0].mxu0
    %v297 = vpop.f32.mrb[0].mxu0
    %v298 = vadd.f32 0.0, %v297
    %v299 = vpop.f32.mrb[0].mxu0
    %300 = vmatprep.mubr.bf16.mxu0 0
    %301 = vmatmul.mubr.bf16.gmra.mrb[0].mxu0 %v171
    %v302 = vpop.f32.mrb[0].mxu0
    %v303 = vadd.f32 0.0, %v302
    %v304 = vpop.f32.mrb[0].mxu0
    %v305 = vpop.f32.mrb[0].mxu0
    %v306 = vadd.f32 0.0, %v305
    %v307 = vpop.f32.mrb[0].mxu0
    %308 = vmatprep.mubr.bf16.mxu0 0
    %309 = vmatmul.mubr.bf16.gmra.mrb[0].mxu0 %v174
    %v310 = vpop.f32.mrb[0].mxu0
    %v311 = vadd.f32 0.0, %v310
    %v312 = vpop.f32.mrb[0].mxu0
    %v313 = vpop.f32.mrb[0].mxu0
    %v314 = vadd.f32 0.0, %v313
    %v315 = vpop.f32.mrb[0].mxu0
    %316 = vmatprep.mubr.bf16.mxu0 0
    %317 = vmatmul.mubr.bf16.gmra.mrb[0].mxu0 %v177
    %v318 = vpop.f32.mrb[0].mxu0
    %v319 = vadd.f32 0.0, %v318
    %v320 = vpop.f32.mrb[0].mxu0
    %v321 = vpop.f32.mrb[0].mxu0
    %v322 = vadd.f32 0.0, %v321
    %v323 = vpop.f32.mrb[0].mxu0
    %324 = vmatprep.mubr.bf16.mxu0 0
    %325 = vmatmul.mubr.bf16.gmra.mrb[0].mxu0 %v180
    %v326 = vpop.f32.mrb[0].mxu0
    %v327 = vadd.f32 0.0, %v326
    %v328 = vpop.f32.mrb[0].mxu0
    %v329 = vpop.f32.mrb[0].mxu0
    %v330 = vadd.f32 0.0, %v329
    %v331 = vpop.f32.mrb[0].mxu0
    %332 = vmatprep.mubr.bf16.mxu0 0
    %333 = vmatmul.mubr.bf16.gmra.mrb[0].mxu0 %v183
    %v334 = vpop.f32.mrb[0].mxu0
    %v335 = vadd.f32 0.0, %v334
    %v336 = vpop.f32.mrb[0].mxu0
    %v337 = vpop.f32.mrb[0].mxu0
    %v338 = vadd.f32 0.0, %v337
    %v339 = vpop.f32.mrb[0].mxu0
    %340 = vmatprep.mubr.bf16.mxu0 0
    %341 = vmatmul.mubr.bf16.gmra.mrb[0].mxu0 %v186
    %v342 = vpop.f32.mrb[0].mxu0
    %v343 = vadd.f32 0.0, %v342
    %v344 = vpop.f32.mrb[0].mxu0
    %v345 = vpop.f32.mrb[0].mxu0
    %v346 = vadd.f32 0.0, %v345
    %v347 = vpop.f32.mrb[0].mxu0
    %348 = vdwg.mxu0
    %349 = vst [vmem:[#allocation2] sm:$0xff] %v223
    %350 = vst [vmem:[#allocation2 + $0x8] sm:$0xff] %v226
    %351 = vst [vmem:[#allocation2 + $0x10] sm:$0xff] %v231
    %352 = vst [vmem:[#allocation2 + $0x18] sm:$0xff] %v234
    %353 = vst [vmem:[#allocation2 + $0x20] sm:$0xff] %v239
    %354 = vst [vmem:[#allocation2 + $0x28] sm:$0xff] %v242
    %355 = vst [vmem:[#allocation2 + $0x30] sm:$0xff] %v247
    %356 = vst [vmem:[#allocation2 + $0x38] sm:$0xff] %v250
    %357 = vst [vmem:[#allocation2 + $0x40] sm:$0xff] %v255
    %358 = vst [vmem:[#allocation2 + $0x48] sm:$0xff] %v258
    %359 = vst [vmem:[#allocation2 + $0x50] sm:$0xff] %v263
    %360 = vst [vmem:[#allocation2 + $0x58] sm:$0xff] %v266
    %361 = vst [vmem:[#allocation2 + $0x60] sm:$0xff] %v271
    %362 = vst [vmem:[#allocation2 + $0x68] sm:$0xff] %v274
    %363 = vst [vmem:[#allocation2 + $0x70] sm:$0xff] %v279
    %364 = vst [vmem:[#allocation2 + $0x78] sm:$0xff] %v282
    %365 = vst [vmem:[#allocation2 + $0x80] sm:$0xff] %v287
    %366 = vst [vmem:[#allocation2 + $0x88] sm:$0xff] %v290
    %367 = vst [vmem:[#allocation2 + $0x90] sm:$0xff] %v295
    %368 = vst [vmem:[#allocation2 + $0x98] sm:$0xff] %v298
    %369 = vst [vmem:[#allocation2 + $0xa0] sm:$0xff] %v303
    %370 = vst [vmem:[#allocation2 + $0xa8] sm:$0xff] %v306
    %371 = vst [vmem:[#allocation2 + $0xb0] sm:$0xff] %v311
    %372 = vst [vmem:[#allocation2 + $0xb8] sm:$0xff] %v314
    %373 = vst [vmem:[#allocation2 + $0xc0] sm:$0xff] %v319
    %374 = vst [vmem:[#allocation2 + $0xc8] sm:$0xff] %v322
    %375 = vst [vmem:[#allocation2 + $0xd0] sm:$0xff] %v327
    %376 = vst [vmem:[#allocation2 + $0xd8] sm:$0xff] %v330
    %377 = vst [vmem:[#allocation2 + $0xe0] sm:$0xff] %v335
    %378 = vst [vmem:[#allocation2 + $0xe8] sm:$0xff] %v338
    %379 = vst [vmem:[#allocation2 + $0xf0] sm:$0xff] %v343
    %380 = vst [vmem:[#allocation2 + $0xf8] sm:$0xff] %v346
    %v381 = vld [vmem:[%s2] sm:$0xf]
    %v382 = vld [vmem:[%s2 + $0x4] sm:$0xf]
    %v385 = vunpack.c.l.b16 %v381
    %v386 = vunpack.c.l.b16 %v382
    %v387 = vpack.c.b16 %v386, %v385
    %389 = vmatprep.subr.bf16.mxu0 0
    %390 = vmatpush1.bf16.msra.mxu0 %v387
    %391 = vmatprep.subr.bf16.mxu0 0
    %392 = vmatpush1.bf16.msra.mxu0 0
    %393 = vmatprep.subr.bf16.mxu0 0
    %394 = vmatpush1.bf16.msra.mxu0 0
    %395 = vmatprep.subr.bf16.mxu0 0
    %396 = vmatpush1.bf16.msra.mxu0 0
    %397 = vmatprep.subr.bf16.mxu0 0
    %398 = vmatpush1.bf16.msra.mxu0 0
    %399 = vmatprep.subr.bf16.mxu0 0
    %400 = vmatpush1.bf16.msra.mxu0 0
    %401 = vmatprep.subr.bf16.mxu0 0
    %402 = vmatpush1.bf16.msra.mxu0 0
    %403 = vmatprep.subr.bf16.mxu0 0
    %404 = vmatpush1.bf16.msra.mxu0 0
    %405 = vmatprep.subr.bf16.mxu0 0
    %406 = vmatpush1.bf16.msra.mxu0 0
    %407 = vmatprep.subr.bf16.mxu0 0
    %408 = vmatpush1.bf16.msra.mxu0 0
    %409 = vmatprep.subr.bf16.mxu0 0
    %410 = vmatpush1.bf16.msra.mxu0 0
    %411 = vmatprep.subr.bf16.mxu0 0
    %412 = vmatpush1.bf16.msra.mxu0 0
    %413 = vmatprep.subr.bf16.mxu0 0
    %414 = vmatpush1.bf16.msra.mxu0 0
    %415 = vmatprep.subr.bf16.mxu0 0
    %416 = vmatpush1.bf16.msra.mxu0 0
    %417 = vmatprep.subr.bf16.mxu0 0
    %418 = vmatpush1.bf16.msra.mxu0 0
    %419 = vmatprep.subr.bf16.mxu0 0
    %420 = vmatpush1.bf16.msra.mxu0 0
    %421 = vmatprep.mubr.bf16.mxu0 0
    %422 = vmatmul.mubr.bf16.gmra.mrb[0].mxu0 %v141
    %v423 = vpop.f32.mrb[0].mxu0
    %v424 = vadd.f32 0.0, %v423
    %v425 = vpop.f32.mrb[0].mxu0
    %v426 = vpop.f32.mrb[0].mxu0
    %v427 = vadd.f32 0.0, %v426
    %v428 = vpop.f32.mrb[0].mxu0
    %429 = vmatprep.mubr.bf16.mxu0 0
    %430 = vmatmul.mubr.bf16.gmra.mrb[0].mxu0 %v144
    %v431 = vpop.f32.mrb[0].mxu0
    %v432 = vadd.f32 0.0, %v431
    %v433 = vpop.f32.mrb[0].mxu0
    %v434 = vpop.f32.mrb[0].mxu0
    %v435 = vadd.f32 0.0, %v434
    %v436 = vpop.f32.mrb[0].mxu0
    %437 = vmatprep.mubr.bf16.mxu0 0
    %438 = vmatmul.mubr.bf16.gmra.mrb[0].mxu0 %v147
    %v439 = vpop.f32.mrb[0].mxu0
    %v440 = vadd.f32 0.0, %v439
    %v441 = vpop.f32.mrb[0].mxu0
    %v442 = vpop.f32.mrb[0].mxu0
    %v443 = vadd.f32 0.0, %v442
    %v444 = vpop.f32.mrb[0].mxu0
    %445 = vmatprep.mubr.bf16.mxu0 0
    %446 = vmatmul.mubr.bf16.gmra.mrb[0].mxu0 %v150
    %v447 = vpop.f32.mrb[0].mxu0
    %v448 = vadd.f32 0.0, %v447
    %v449 = vpop.f32.mrb[0].mxu0
    %v450 = vpop.f32.mrb[0].mxu0
    %v451 = vadd.f32 0.0, %v450
    %v452 = vpop.f32.mrb[0].mxu0
    %453 = vmatprep.mubr.bf16.mxu0 0
    %454 = vmatmul.mubr.bf16.gmra.mrb[0].mxu0 %v153
    %v455 = vpop.f32.mrb[0].mxu0
    %v456 = vadd.f32 0.0, %v455
    %v457 = vpop.f32.mrb[0].mxu0
    %v458 = vpop.f32.mrb[0].mxu0
    %v459 = vadd.f32 0.0, %v458
    %v460 = vpop.f32.mrb[0].mxu0
    %461 = vmatprep.mubr.bf16.mxu0 0
    %462 = vmatmul.mubr.bf16.gmra.mrb[0].mxu0 %v156
    %v463 = vpop.f32.mrb[0].mxu0
    %v464 = vadd.f32 0.0, %v463
    %v465 = vpop.f32.mrb[0].mxu0
    %v466 = vpop.f32.mrb[0].mxu0
    %v467 = vadd.f32 0.0, %v466
    %v468 = vpop.f32.mrb[0].mxu0
    %469 = vmatprep.mubr.bf16.mxu0 0
    %470 = vmatmul.mubr.bf16.gmra.mrb[0].mxu0 %v159
    %v471 = vpop.f32.mrb[0].mxu0
    %v472 = vadd.f32 0.0, %v471
    %v473 = vpop.f32.mrb[0].mxu0
    %v474 = vpop.f32.mrb[0].mxu0
    %v475 = vadd.f32 0.0, %v474
    %v476 = vpop.f32.mrb[0].mxu0
    %477 = vmatprep.mubr.bf16.mxu0 0
    %478 = vmatmul.mubr.bf16.gmra.mrb[0].mxu0 %v162
    %v479 = vpop.f32.mrb[0].mxu0
    %v480 = vadd.f32 0.0, %v479
    %v481 = vpop.f32.mrb[0].mxu0
    %v482 = vpop.f32.mrb[0].mxu0
    %v483 = vadd.f32 0.0, %v482
    %v484 = vpop.f32.mrb[0].mxu0
    %485 = vmatprep.mubr.bf16.mxu0 0
    %486 = vmatmul.mubr.bf16.gmra.mrb[0].mxu0 %v165
    %v487 = vpop.f32.mrb[0].mxu0
    %v488 = vadd.f32 0.0, %v487
    %v489 = vpop.f32.mrb[0].mxu0
    %v490 = vpop.f32.mrb[0].mxu0
    %v491 = vadd.f32 0.0, %v490
    %v492 = vpop.f32.mrb[0].mxu0
    %493 = vmatprep.mubr.bf16.mxu0 0
    %494 = vmatmul.mubr.bf16.gmra.mrb[0].mxu0 %v168
    %v495 = vpop.f32.mrb[0].mxu0
    %v496 = vadd.f32 0.0, %v495
    %v497 = vpop.f32.mrb[0].mxu0
    %v498 = vpop.f32.mrb[0].mxu0
    %v499 = vadd.f32 0.0, %v498
    %v500 = vpop.f32.mrb[0].mxu0
    %501 = vmatprep.mubr.bf16.mxu0 0
    %502 = vmatmul.mubr.bf16.gmra.mrb[0].mxu0 %v171
    %v503 = vpop.f32.mrb[0].mxu0
    %v504 = vadd.f32 0.0, %v503
    %v505 = vpop.f32.mrb[0].mxu0
    %v506 = vpop.f32.mrb[0].mxu0
    %v507 = vadd.f32 0.0, %v506
    %v508 = vpop.f32.mrb[0].mxu0
    %509 = vmatprep.mubr.bf16.mxu0 0
    %510 = vmatmul.mubr.bf16.gmra.mrb[0].mxu0 %v174
    %v511 = vpop.f32.mrb[0].mxu0
    %v512 = vadd.f32 0.0, %v511
    %v513 = vpop.f32.mrb[0].mxu0
    %v514 = vpop.f32.mrb[0].mxu0
    %v515 = vadd.f32 0.0, %v514
    %v516 = vpop.f32.mrb[0].mxu0
    %517 = vmatprep.mubr.bf16.mxu0 0
    %518 = vmatmul.mubr.bf16.gmra.mrb[0].mxu0 %v177
    %v519 = vpop.f32.mrb[0].mxu0
    %v520 = vadd.f32 0.0, %v519
    %v521 = vpop.f32.mrb[0].mxu0
    %v522 = vpop.f32.mrb[0].mxu0
    %v523 = vadd.f32 0.0, %v522
    %v524 = vpop.f32.mrb[0].mxu0
    %525 = vmatprep.mubr.bf16.mxu0 0
    %526 = vmatmul.mubr.bf16.gmra.mrb[0].mxu0 %v180
    %v527 = vpop.f32.mrb[0].mxu0
    %v528 = vadd.f32 0.0, %v527
    %v529 = vpop.f32.mrb[0].mxu0
    %v530 = vpop.f32.mrb[0].mxu0
    %v531 = vadd.f32 0.0, %v530
    %v532 = vpop.f32.mrb[0].mxu0
    %533 = vmatprep.mubr.bf16.mxu0 0
    %534 = vmatmul.mubr.bf16.gmra.mrb[0].mxu0 %v183
    %v535 = vpop.f32.mrb[0].mxu0
    %v536 = vadd.f32 0.0, %v535
    %v537 = vpop.f32.mrb[0].mxu0
    %v538 = vpop.f32.mrb[0].mxu0
    %v539 = vadd.f32 0.0, %v538
    %v540 = vpop.f32.mrb[0].mxu0
    %541 = vmatprep.mubr.bf16.mxu0 0
    %542 = vmatmul.mubr.bf16.gmra.mrb[0].mxu0 %v186
    %v543 = vpop.f32.mrb[0].mxu0
    %v544 = vadd.f32 0.0, %v543
    %v545 = vpop.f32.mrb[0].mxu0
    %v546 = vpop.f32.mrb[0].mxu0
    %v547 = vadd.f32 0.0, %v546
    %v548 = vpop.f32.mrb[0].mxu0
    %549 = vdwg.mxu0
    %550 = vst [vmem:[#allocation4] sm:$0xff] %v424
    %551 = vst [vmem:[#allocation4 + $0x8] sm:$0xff] %v427
    %552 = vst [vmem:[#allocation4 + $0x10] sm:$0xff] %v432
    %553 = vst [vmem:[#allocation4 + $0x18] sm:$0xff] %v435
    %554 = vst [vmem:[#allocation4 + $0x20] sm:$0xff] %v440
    %555 = vst [vmem:[#allocation4 + $0x28] sm:$0xff] %v443
    %556 = vst [vmem:[#allocation4 + $0x30] sm:$0xff] %v448
    %557 = vst [vmem:[#allocation4 + $0x38] sm:$0xff] %v451
    %558 = vst [vmem:[#allocation4 + $0x40] sm:$0xff] %v456
    %559 = vst [vmem:[#allocation4 + $0x48] sm:$0xff] %v459
    %560 = vst [vmem:[#allocation4 + $0x50] sm:$0xff] %v464
    %561 = vst [vmem:[#allocation4 + $0x58] sm:$0xff] %v467
    %562 = vst [vmem:[#allocation4 + $0x60] sm:$0xff] %v472
    %563 = vst [vmem:[#allocation4 + $0x68] sm:$0xff] %v475
    %564 = vst [vmem:[#allocation4 + $0x70] sm:$0xff] %v480
    %565 = vst [vmem:[#allocation4 + $0x78] sm:$0xff] %v483
    %566 = vst [vmem:[#allocation4 + $0x80] sm:$0xff] %v488
    %567 = vst [vmem:[#allocation4 + $0x88] sm:$0xff] %v491
    %568 = vst [vmem:[#allocation4 + $0x90] sm:$0xff] %v496
    %569 = vst [vmem:[#allocation4 + $0x98] sm:$0xff] %v499
    %570 = vst [vmem:[#allocation4 + $0xa0] sm:$0xff] %v504
    %571 = vst [vmem:[#allocation4 + $0xa8] sm:$0xff] %v507
    %572 = vst [vmem:[#allocation4 + $0xb0] sm:$0xff] %v512
    %573 = vst [vmem:[#allocation4 + $0xb8] sm:$0xff] %v515
    %574 = vst [vmem:[#allocation4 + $0xc0] sm:$0xff] %v520
    %575 = vst [vmem:[#allocation4 + $0xc8] sm:$0xff] %v523
    %576 = vst [vmem:[#allocation4 + $0xd0] sm:$0xff] %v528
    %577 = vst [vmem:[#allocation4 + $0xd8] sm:$0xff] %v531
    %578 = vst [vmem:[#allocation4 + $0xe0] sm:$0xff] %v536
    %579 = vst [vmem:[#allocation4 + $0xe8] sm:$0xff] %v539
    %580 = vst [vmem:[#allocation4 + $0xf0] sm:$0xff] %v544
    %581 = vst [vmem:[#allocation4 + $0xf8] sm:$0xff] %v547
    // Predicated region
    $region14: #{tpu_custom_call.1} parent=1 // pred_check
      _
    $region15: #{tpu_custom_call.1} parent=1 // pred_check_branch
      %583 = sbr.rel (0) target = $region17
    $region16: #{tpu_custom_call.1} parent=1 // pred_region
      %s585 = ssub.s32 4096, 4096
      %586 = vsyncadd [#allocation3], %s585
      %s587 = sshll.u32 [#allocation2], 4
      %s588 = int_to_ptr.vmem [resolvable:$true] %s587
      %593 = dma.vmem_to_hbm [thread:$0]  %s588, 4096, %s3, [#allocation3], 128, 128, 8
    $region17: #{tpu_custom_call.1} parent=1 // pred_fallthru
      _
    // Predicated region
    $region18: #{tpu_custom_call.1} parent=1 // pred_check
      _
    $region19: #{tpu_custom_call.1} parent=1 // pred_check_branch
      %595 = sbr.rel (0) target = $region21
    $region20: #{tpu_custom_call.1} parent=1 // pred_region
      %s597 = ssub.s32 4096, 4096
      %598 = vsyncadd [#allocation5], %s597
      %s599 = sshll.u32 [#allocation4], 4
      %s600 = int_to_ptr.vmem [resolvable:$true] %s599
      %605 = dma.vmem_to_hbm [thread:$0]  %s600, 4096, %s4, [#allocation5], 128, 128, 8
    $region21: #{tpu_custom_call.1} parent=1 // pred_fallthru
      _
    // Predicated region
    $region22: #{tpu_custom_call.1} parent=1 // pred_check
      _
    $region23: #{tpu_custom_call.1} parent=1 // pred_check_branch
      %607 = sbr.rel (0) target = $region25
    $region24: #{tpu_custom_call.1} parent=1 // pred_region
      %608 = dma.done [#allocation3], 4096
    $region25: #{tpu_custom_call.1} parent=1 // pred_fallthru
      _
    // Predicated region
    $region26: #{tpu_custom_call.1} parent=1 // pred_check
      _
    $region27: #{tpu_custom_call.1} parent=1 // pred_check_branch
      %610 = sbr.rel (0) target = $region29
    $region28: #{tpu_custom_call.1} parent=1 // pred_region
      %611 = dma.done [#allocation5], 4096
    $region29: #{tpu_custom_call.1} parent=1 // pred_fallthru
      _
    %612 = vsyncpa [#allocation3], 1
    %613 = vsyncpa [#allocation5], 1

</llo_original>
